<compile_context>
chip_gen: v7x
topology: tpu7x:2x2x1
jax: 0.10.0
libtpu: 0.0.40
codegen_flags: <defaults>
</compile_context>

<pallas_src>
import jax
import jax.numpy as jnp
from jax.experimental import pallas as pl
from jax.experimental.pallas import tpu as pltpu

_LANES = 128
_SUBLANES = 8


def _round_up(x, m):
    return ((x + m - 1) // m) * m


def _ccm_kernel(ccm_ref, rgb_ref, out_ref):
    # ccm_ref: (9,) f32 scalars in SMEM (scalar-prefetched).
    # rgb_ref / out_ref: (3, tile_rows, 128) or (3, tile_n) VMEM tiles.
    r = rgb_ref[0].astype(jnp.float32)
    g = rgb_ref[1].astype(jnp.float32)
    b = rgb_ref[2].astype(jnp.float32)
    dt = out_ref.dtype
    out_ref[0] = (ccm_ref[0] * r + ccm_ref[1] * g + ccm_ref[2] * b).astype(dt)
    out_ref[1] = (ccm_ref[3] * r + ccm_ref[4] * g + ccm_ref[5] * b).astype(dt)
    out_ref[2] = (ccm_ref[6] * r + ccm_ref[7] * g + ccm_ref[8] * b).astype(dt)


def ccm_forward(rgb_data, ccm_flat, *, tile_rows=2048):
    """Apply the 3x3 CCM to rgb_data of shape (3, N). Returns (3, N).

    ccm_flat: (9,) row-major [ccm_calc1..ccm_calc9] of the PyTorch module.
    Output dtype matches the input dtype (bf16 input -> bf16 output, with the
    multiply-accumulate done in f32 inside the kernel).
    """
    assert rgb_data.ndim == 2 and rgb_data.shape[0] == 3, \
        "expected channel-first (3, N) input"
    n = rgb_data.shape[1]
    dtype = rgb_data.dtype
    ccm_flat = jnp.asarray(ccm_flat, dtype=jnp.float32)
    cparams = pltpu.CompilerParams(dimension_semantics=("parallel",))

    if n % _LANES == 0:
        # Aligned path: fold pixels to a lane-dense (rows, 128) slab per channel.
        rows = n // _LANES
        x = rgb_data.reshape(3, rows, _LANES)

        tr = tile_rows
        if rows >= 4 * _SUBLANES:
            # Ensure >=2 grid blocks when there is enough work, so the
            # "parallel" axis can shard across both v7x TensorCores.
            tr = min(tr, _round_up(pl.cdiv(rows, 2), _SUBLANES))
        if tr >= rows:
            tr = rows                              # full extent: always legal
        else:
            tr = max(_SUBLANES, (tr // _SUBLANES) * _SUBLANES)  # (8,128) rule

        grid = (pl.cdiv(rows, tr),)
        out = pl.pallas_call(
            _ccm_kernel,
            out_shape=jax.ShapeDtypeStruct((3, rows, _LANES), dtype),
            grid_spec=pltpu.PrefetchScalarGridSpec(
                num_scalar_prefetch=1,             # ccm_flat -> SMEM
                grid=grid,
                in_specs=[pl.BlockSpec((3, tr, _LANES),
                                       lambda i, ccm: (0, i, 0))],
                out_specs=pl.BlockSpec((3, tr, _LANES),
                                       lambda i, ccm: (0, i, 0)),
            ),
            compiler_params=cparams,
        )(ccm_flat, x)
        return out.reshape(3, n)

    # Unaligned path: tile the raw (3, N) array directly. The sublane dim (3)
    # equals the full array extent so it is legal; the ragged last block relies
    # on Pallas write-masking. No jnp.pad / output-slice HBM passes.
    tn = tile_rows * _LANES
    if n >= 32 * _LANES:
        # Enough pixels to give both v7x TensorCores a block.
        tn = min(tn, _round_up(pl.cdiv(n, 2), _LANES))
    if tn >= n:
        tn = n                                     # single full-extent block

    grid = (pl.cdiv(n, tn),)
    out = pl.pallas_call(
        _ccm_kernel,
        out_shape=jax.ShapeDtypeStruct((3, n), dtype),
        grid_spec=pltpu.PrefetchScalarGridSpec(
            num_scalar_prefetch=1,
            grid=grid,
            in_specs=[pl.BlockSpec((3, tn), lambda i, ccm: (0, i))],
            out_specs=pl.BlockSpec((3, tn), lambda i, ccm: (0, i)),
        ),
        compiler_params=cparams,
    )(ccm_flat, rgb_data)
    return out


def ccm_reference(rgb_data, ccm_flat):
    """Pure-JAX reference matching the PyTorch forward exactly (f32)."""
    r, g, b = rgb_data[0], rgb_data[1], rgb_data[2]
    row0 = (ccm_flat[0] * r + ccm_flat[1] * g + ccm_flat[2] * b) / 1.0
    row1 = (ccm_flat[3] * r + ccm_flat[4] * g + ccm_flat[5] * b) / 1.0
    row2 = (ccm_flat[6] * r + ccm_flat[7] * g + ccm_flat[8] * b) / 1.0
    return jnp.stack([row0, row1, row2], axis=0)


if __name__ == "__main__":
    key = jax.random.PRNGKey(0)

    # Deterministic CCM coefficients (ccm_calc1..ccm_calc9, row-major).
    ccm_flat = jnp.array(
        [1.50, -0.30, -0.20,
         -0.25, 1.40, -0.15,
         -0.10, -0.35, 1.45],
        dtype=jnp.float32,
    )

    k1, k2 = jax.random.split(key)

    # 1) Small aligned case: 3 channels x (16*16) pixels, channel-first layout.
    H, W = 16, 16
    rgb_data = jax.random.uniform(k1, (3, H * W), dtype=jnp.float32)
    out = jax.block_until_ready(ccm_forward(rgb_data, ccm_flat))
    ref = ccm_reference(rgb_data, ccm_flat)
    assert out.shape == rgb_data.shape
    assert jnp.allclose(out, ref, atol=1e-6, rtol=1e-6), "aligned mismatch"

    # 2) Ragged pixel count (N % 128 != 0): direct (3, N) tiling, no pad/slice.
    rgb_ragged = jax.random.uniform(k2, (3, 300), dtype=jnp.float32)
    out_r = jax.block_until_ready(ccm_forward(rgb_ragged, ccm_flat))
    ref_r = ccm_reference(rgb_ragged, ccm_flat)
    assert out_r.shape == rgb_ragged.shape
    assert jnp.allclose(out_r, ref_r, atol=1e-6, rtol=1e-6), "ragged mismatch"

    # 3) bf16 I/O path (f32 math in-kernel) — looser tolerance vs f32 reference.
    rgb_bf16 = rgb_data.astype(jnp.bfloat16)
    out_bf = jax.block_until_ready(ccm_forward(rgb_bf16, ccm_flat))
    ref_bf = ccm_reference(rgb_bf16.astype(jnp.float32), ccm_flat)
    assert out_bf.dtype == jnp.bfloat16
    assert jnp.allclose(out_bf.astype(jnp.float32), ref_bf,
                        atol=2e-2, rtol=2e-2), "bf16 mismatch"

    print("KERNEL_OK")
</pallas_src>

<mosaic_0001>
module attributes {stable_mosaic.version = 11 : i64} {
  func.func @_ccm_kernel(%arg0: i32, %arg1: memref<9xf32, #tpu.memory_space<smem>>, %arg2: memref<3x2x128xf32, #tpu.memory_space<vmem>>, %arg3: memref<3x2x128xf32, #tpu.memory_space<vmem>>) attributes {dimension_semantics = [#tpu.dimension_semantics<parallel>], iteration_bounds = array<i64: 1>, scalar_prefetch = 1 : i64, scratch_operands = 0 : i64, tpu.core_type = #tpu.core_type<tc>, window_params = [{transform_indices = @transform_0, window_bounds = array<i64: 3, 2, 128>}, {transform_indices = @transform_1, window_bounds = array<i64: 3, 2, 128>}]} {
    %c0 = arith.constant 0 : index
    %c0_0 = arith.constant 0 : index
    %c0_1 = arith.constant 0 : index
    %0 = vector.load %arg2[%c0, %c0_0, %c0_1] : memref<3x2x128xf32, #tpu.memory_space<vmem>>, vector<1x2x128xf32>
    %1 = vector.shape_cast %0 : vector<1x2x128xf32> to vector<2x128xf32>
    %c1 = arith.constant 1 : index
    %c0_2 = arith.constant 0 : index
    %c0_3 = arith.constant 0 : index
    %2 = vector.load %arg2[%c1, %c0_2, %c0_3] : memref<3x2x128xf32, #tpu.memory_space<vmem>>, vector<1x2x128xf32>
    %3 = vector.shape_cast %2 : vector<1x2x128xf32> to vector<2x128xf32>
    %c2 = arith.constant 2 : index
    %c0_4 = arith.constant 0 : index
    %c0_5 = arith.constant 0 : index
    %4 = vector.load %arg2[%c2, %c0_4, %c0_5] : memref<3x2x128xf32, #tpu.memory_space<vmem>>, vector<1x2x128xf32>
    %5 = vector.shape_cast %4 : vector<1x2x128xf32> to vector<2x128xf32>
    %c0_6 = arith.constant 0 : index
    %6 = memref.load %arg1[%c0_6] : memref<9xf32, #tpu.memory_space<smem>>
    %7 = vector.broadcast %6 : f32 to vector<2x128xf32>
    %8 = arith.mulf %7, %1 : vector<2x128xf32>
    %c1_7 = arith.constant 1 : index
    %9 = memref.load %arg1[%c1_7] : memref<9xf32, #tpu.memory_space<smem>>
    %10 = vector.broadcast %9 : f32 to vector<2x128xf32>
    %11 = arith.mulf %10, %3 : vector<2x128xf32>
    %12 = arith.addf %8, %11 : vector<2x128xf32>
    %c2_8 = arith.constant 2 : index
    %13 = memref.load %arg1[%c2_8] : memref<9xf32, #tpu.memory_space<smem>>
    %14 = vector.broadcast %13 : f32 to vector<2x128xf32>
    %15 = arith.mulf %14, %5 : vector<2x128xf32>
    %16 = arith.addf %12, %15 : vector<2x128xf32>
    %c0_9 = arith.constant 0 : index
    %c0_10 = arith.constant 0 : index
    %c0_11 = arith.constant 0 : index
    %17 = vector.load %arg3[%c0_9, %c0_10, %c0_11] : memref<3x2x128xf32, #tpu.memory_space<vmem>>, vector<1x2x128xf32>
    %18 = vector.shape_cast %17 : vector<1x2x128xf32> to vector<2x128xf32>
    %19 = vector.shape_cast %16 : vector<2x128xf32> to vector<1x2x128xf32>
    tpu.vector_store %arg3[%c0_9, %c0_10, %c0_11], %19 {strides = array<i32>} : memref<3x2x128xf32, #tpu.memory_space<vmem>>, vector<1x2x128xf32>,
    %c3 = arith.constant 3 : index
    %20 = memref.load %arg1[%c3] : memref<9xf32, #tpu.memory_space<smem>>
    %21 = vector.broadcast %20 : f32 to vector<2x128xf32>
    %22 = arith.mulf %21, %1 : vector<2x128xf32>
    %c4 = arith.constant 4 : index
    %23 = memref.load %arg1[%c4] : memref<9xf32, #tpu.memory_space<smem>>
    %24 = vector.broadcast %23 : f32 to vector<2x128xf32>
    %25 = arith.mulf %24, %3 : vector<2x128xf32>
    %26 = arith.addf %22, %25 : vector<2x128xf32>
    %c5 = arith.constant 5 : index
    %27 = memref.load %arg1[%c5] : memref<9xf32, #tpu.memory_space<smem>>
    %28 = vector.broadcast %27 : f32 to vector<2x128xf32>
    %29 = arith.mulf %28, %5 : vector<2x128xf32>
    %30 = arith.addf %26, %29 : vector<2x128xf32>
    %c1_12 = arith.constant 1 : index
    %c0_13 = arith.constant 0 : index
    %c0_14 = arith.constant 0 : index
    %31 = vector.load %arg3[%c1_12, %c0_13, %c0_14] : memref<3x2x128xf32, #tpu.memory_space<vmem>>, vector<1x2x128xf32>
    %32 = vector.shape_cast %31 : vector<1x2x128xf32> to vector<2x128xf32>
    %33 = vector.shape_cast %30 : vector<2x128xf32> to vector<1x2x128xf32>
    tpu.vector_store %arg3[%c1_12, %c0_13, %c0_14], %33 {strides = array<i32>} : memref<3x2x128xf32, #tpu.memory_space<vmem>>, vector<1x2x128xf32>,
    %c6 = arith.constant 6 : index
    %34 = memref.load %arg1[%c6] : memref<9xf32, #tpu.memory_space<smem>>
    %35 = vector.broadcast %34 : f32 to vector<2x128xf32>
    %36 = arith.mulf %35, %1 : vector<2x128xf32>
    %c7 = arith.constant 7 : index
    %37 = memref.load %arg1[%c7] : memref<9xf32, #tpu.memory_space<smem>>
    %38 = vector.broadcast %37 : f32 to vector<2x128xf32>
    %39 = arith.mulf %38, %3 : vector<2x128xf32>
    %40 = arith.addf %36, %39 : vector<2x128xf32>
    %c8 = arith.constant 8 : index
    %41 = memref.load %arg1[%c8] : memref<9xf32, #tpu.memory_space<smem>>
    %42 = vector.broadcast %41 : f32 to vector<2x128xf32>
    %43 = arith.mulf %42, %5 : vector<2x128xf32>
    %44 = arith.addf %40, %43 : vector<2x128xf32>
    %c2_15 = arith.constant 2 : index
    %c0_16 = arith.constant 0 : index
    %c0_17 = arith.constant 0 : index
    %45 = vector.load %arg3[%c2_15, %c0_16, %c0_17] : memref<3x2x128xf32, #tpu.memory_space<vmem>>, vector<1x2x128xf32>
    %46 = vector.shape_cast %45 : vector<1x2x128xf32> to vector<2x128xf32>
    %47 = vector.shape_cast %44 : vector<2x128xf32> to vector<1x2x128xf32>
    tpu.vector_store %arg3[%c2_15, %c0_16, %c0_17], %47 {strides = array<i32>} : memref<3x2x128xf32, #tpu.memory_space<vmem>>, vector<1x2x128xf32>,
    return
  }
  func.func @transform_0(%arg0: i32, %arg1: memref<9xf32, #tpu.memory_space<smem>>) -> (i32, i32, i32) {
    %c0_i32 = arith.constant 0 : i32
    %c0_i32_0 = arith.constant 0 : i32
    %c0_i32_1 = arith.constant 0 : i32
    return %c0_i32, %arg0, %c0_i32_0 : i32, i32, i32
  }
  func.func @transform_1(%arg0: i32, %arg1: memref<9xf32, #tpu.memory_space<smem>>) -> (i32, i32, i32) {
    %c0_i32 = arith.constant 0 : i32
    %c0_i32_0 = arith.constant 0 : i32
    %c0_i32_1 = arith.constant 0 : i32
    return %c0_i32, %arg0, %c0_i32_0 : i32, i32, i32
  }
}

</mosaic_0001>

<llo_original>
// kernel: tpu_custom_call.1
$region0: #{tpu_custom_call.1}
  #allocation0 [shape = 'u32[]', space=smem, size = 0x4, offset = 0x4, fixed_abs, tag = 'smem constant byte address 0x4 - core index']
  #allocation1 [shape = 'u32[144,128]{1,0:T(1,128)}', space=vmem, size = 0x12000, scoped, tag = 'internal scratch']
  #allocation2 [shape = 's32[1]{0}', space=sflag, size = 0x4, scoped, tag = 'scoped memory for tpu_custom_call.1']
  #allocation3 [shape = 'u8[512]{0}', space=smem, size = 0x200, scoped, tag = 'prefetched SMEM operand 0']
  %s0 = inlined_call_operand.hbm [shape: f32[9], index: 0, kind: input, shape index: {}]
  %s1 = inlined_call_operand.hbm [shape: f32[3,2,128], index: 1, kind: input, shape index: {}]
  %s2 = inlined_call_operand.hbm [shape: f32[3,2,128], index: 2, kind: output, shape index: {}]
  %s3 = sld [smem:[#allocation0]]
  $region18: #{tpu_custom_call.1} parent=0
    _
  %s5 = ssub.s32 1, %s3
  %s6 = scalar_select 0, %s5, %s3
  %8 = dma.hbm_to_smem %s0, 16, [#allocation3], [#allocation2]
  %9 = dma.done [#allocation2], 16
  %10 = sfence
  $region1: #{tpu_custom_call.1} parent=0
    #allocation4 [shape = 'u8[3072]{0}', space=vmem, size = 0xc00, scoped, tag = 'input window, operand 1, single buffered']
    #allocation5 [shape = 's32[1]{0}', space=sflag, size = 0x4, scoped, tag = 'scoped memory for tpu_custom_call.1']
    #allocation6 [shape = 's32[1]{0}', space=sflag, size = 0x4, scoped, tag = 'scoped memory for tpu_custom_call.1']
    #allocation7 [shape = 'u8[3072]{0}', space=vmem, size = 0xc00, scoped, tag = 'output window, operand 0, single buffered']
    %11 = vsyncpa [#allocation5], 0
    %12 = vsyncpa [#allocation6], 0
    // Predicated region
    $region2: #{tpu_custom_call.1} parent=1 // pred_check
      _
    $region3: #{tpu_custom_call.1} parent=1 // pred_check_branch
      %14 = sbr.rel (0) target = $region5
    $region4: #{tpu_custom_call.1} parent=1 // pred_region
      %s16 = ssub.s32 96, 96
      %17 = vsyncadd [#allocation5], %s16
      %s18 = sshll.u32 [#allocation4], 4
      %s19 = int_to_ptr.vmem [resolvable:$true] %s18
      %24 = dma.hbm_to_vmem [thread:$0]  %s1, 96, %s19, [#allocation5], 32, 32, 2
    $region5: #{tpu_custom_call.1} parent=1 // pred_fallthru
      _
    // Predicated region
    $region6: #{tpu_custom_call.1} parent=1 // pred_check
      _
    $region7: #{tpu_custom_call.1} parent=1 // pred_check_branch
      %26 = sbr.rel (0) target = $region9
    $region8: #{tpu_custom_call.1} parent=1 // pred_region
      %27 = dma.done [#allocation5], 96
    $region9: #{tpu_custom_call.1} parent=1 // pred_fallthru
      _
    %v28 = vld [vmem:[#allocation4] sm:$0x3]
    %s29 = scalar_lea.vmem [#allocation4], 2
    %v30 = vld [vmem:[%s29] sm:$0x3]
    %s31 = scalar_lea.vmem [#allocation4], 4
    %v32 = vld [vmem:[%s31] sm:$0x3]
    %s33 = sld [smem:[#allocation3]]
    %v34 = vstv %s33
    %v35 = vmul.f32 %v34, %v28
    %s36 = sld [smem:[#allocation3 + $0x1]]
    %v37 = vstv %s36
    %v38 = vmul.f32 %v37, %v30
    %v39 = vadd.f32 %v35, %v38
    %s40 = sld [smem:[#allocation3 + $0x2]]
    %v41 = vstv %s40
    %v42 = vmul.f32 %v41, %v32
    %v43 = vadd.f32 %v39, %v42
    %44 = vst [vmem:[#allocation7] sm:$0x3] %v43
    %s45 = sld [smem:[#allocation3 + $0x3]]
    %v46 = vstv %s45
    %v47 = vmul.f32 %v46, %v28
    %s48 = sld [smem:[#allocation3 + $0x4]]
    %v49 = vstv %s48
    %v50 = vmul.f32 %v49, %v30
    %v51 = vadd.f32 %v47, %v50
    %s52 = sld [smem:[#allocation3 + $0x5]]
    %v53 = vstv %s52
    %v54 = vmul.f32 %v53, %v32
    %v55 = vadd.f32 %v51, %v54
    %s56 = scalar_lea.vmem [#allocation7], 2
    %57 = vst [vmem:[%s56] sm:$0x3] %v55
    %s58 = sld [smem:[#allocation3 + $0x6]]
    %v59 = vstv %s58
    %v60 = vmul.f32 %v59, %v28
    %s61 = sld [smem:[#allocation3 + $0x7]]
    %v62 = vstv %s61
    %v63 = vmul.f32 %v62, %v30
    %v64 = vadd.f32 %v60, %v63
    %s65 = sld [smem:[#allocation3 + $0x8]]
    %v66 = vstv %s65
    %v67 = vmul.f32 %v66, %v32
    %v68 = vadd.f32 %v64, %v67
    %s69 = scalar_lea.vmem [#allocation7], 4
    %70 = vst [vmem:[%s69] sm:$0x3] %v68
    // Predicated region
    $region10: #{tpu_custom_call.1} parent=1 // pred_check
      _
    $region11: #{tpu_custom_call.1} parent=1 // pred_check_branch
      %72 = sbr.rel (0) target = $region13
    $region12: #{tpu_custom_call.1} parent=1 // pred_region
      %s74 = ssub.s32 96, 96
      %75 = vsyncadd [#allocation6], %s74
      %s76 = sshll.u32 [#allocation7], 4
      %s77 = int_to_ptr.vmem [resolvable:$true] %s76
      %82 = dma.vmem_to_hbm [thread:$0]  %s77, 96, %s2, [#allocation6], 32, 32, 2
    $region13: #{tpu_custom_call.1} parent=1 // pred_fallthru
      _
    // Predicated region
    $region14: #{tpu_custom_call.1} parent=1 // pred_check
      _
    $region15: #{tpu_custom_call.1} parent=1 // pred_check_branch
      %84 = sbr.rel (0) target = $region17
    $region16: #{tpu_custom_call.1} parent=1 // pred_region
      %85 = dma.done [#allocation6], 96
    $region17: #{tpu_custom_call.1} parent=1 // pred_fallthru
      _
    %86 = vsyncpa [#allocation5], 1
    %87 = vsyncpa [#allocation6], 1

</llo_original>
